<compile_context>
chip_gen: v5e
topology: v5e:2x2
jax: 0.10.0
libtpu: 0.0.40
codegen_flags: <defaults>
</compile_context>

<pallas_src>
import math

import jax
import jax.numpy as jnp
from jax.experimental import pallas as pl
from jax.experimental.pallas import tpu as pltpu


KERNEL_SIZES = (1, 2, 3, 5)
K_MAX = max(KERNEL_SIZES)


def _round_up(n, m):
    return ((n + m - 1) // m) * m


def _text_cnn_kernel(x_ref, w_ref, bias_ref, mask_ref, fcw_ref, fcb_ref, out_ref):
    """One batch tile: fused 4-branch conv + folded BN + ReLU + max-pool + fc."""
    TB, Lp, D = x_ref.shape
    H4 = w_ref.shape[1]

    # (TB, Lp, D) -> (TB*Lp, D); Lp is a multiple of the sublane grain so this
    # merge is layout-friendly.
    x2 = x_ref[...].reshape(TB * Lp, D)

    # Shifted stack: column block j holds x[pos + j, :].  Rows that run past a
    # batch element's end only feed (a) block-weight rows that are zero for the
    # branches that could use them, or (b) positions zeroed by the valid mask
    # before the max, so the zero tail / neighbor rows are harmless.
    pieces = [x2]
    for j in range(1, K_MAX):
        pieces.append(
            jnp.concatenate([x2[j:, :], jnp.zeros((j, D), x2.dtype)], axis=0))
    x_shift = jnp.concatenate(pieces, axis=-1)             # (TB*Lp, K_MAX*D)

    # One fused MXU matmul: all four conv branches (+ folded BN scale) at once.
    y = jnp.dot(x_shift, w_ref[...], preferred_element_type=jnp.float32)
    y = y + bias_ref[...]                                   # conv bias + BN shift (f32)
    y = jnp.maximum(y, 0.0)                                  # ReLU (f32 epilogue)
    y = y.reshape(TB, Lp, H4) * mask_ref[...][None]          # zero invalid positions
    pooled = jnp.max(y, axis=1)                              # global max-pool -> (TB, 4H)

    # fc1; Dropout(0.2) is identity in eval mode.
    logits = jnp.dot(pooled.astype(fcw_ref.dtype), fcw_ref[...],
                     preferred_element_type=jnp.float32) + fcb_ref[...]
    out_ref[...] = logits.astype(out_ref.dtype)


def pack_params(tparams, seq_len, d_model, hidden_dim, num_classes,
                eps=1e-5, matmul_dtype=jnp.bfloat16):
    """Fold eval-mode BatchNorm + conv bias into one block weight/bias row,
    build the valid-position mask and lane-padded fc weights (host side)."""
    D, H = d_model, hidden_dim
    H4 = 4 * H
    Lp = _round_up(seq_len, 16)            # bf16 sublane grain
    Cp = _round_up(num_classes, 128)       # lane-dense output

    w_block = jnp.zeros((K_MAX * D, H4), jnp.float32)
    bias_block = jnp.zeros((1, H4), jnp.float32)
    mask = jnp.zeros((Lp, H4), jnp.float32)

    for bi, k in enumerate(KERNEL_SIZES):
        w = tparams[f"conv{bi}_w"]                       # (H, D, k) torch layout
        b = tparams[f"conv{bi}_b"]                       # (H,)
        s = tparams[f"bn{bi}_gamma"] / jnp.sqrt(tparams[f"bn{bi}_var"] + eps)
        t = tparams[f"bn{bi}_beta"] - tparams[f"bn{bi}_mean"] * s
        w_f = jnp.transpose(w * s[:, None, None], (2, 1, 0))   # (k, D, H), BN folded
        w_block = w_block.at[:k * D, bi * H:(bi + 1) * H].set(w_f.reshape(k * D, H))
        bias_block = bias_block.at[0, bi * H:(bi + 1) * H].set(b * s + t)
        mask = mask.at[:seq_len - k + 1, bi * H:(bi + 1) * H].set(1.0)

    fcw = jnp.zeros((H4, Cp), jnp.float32).at[:, :num_classes].set(
        jnp.transpose(tparams["fc_w"], (1, 0)))
    fcb = jnp.zeros((1, Cp), jnp.float32).at[0, :num_classes].set(tparams["fc_b"])

    return dict(
        w_block=w_block.astype(matmul_dtype),
        bias_block=bias_block,
        mask=mask,
        fcw=fcw.astype(matmul_dtype),
        fcb=fcb,
        num_classes=num_classes,
        seq_len=seq_len,
    )


def text_cnn_forward(x, packed, *, block_b=8):
    B, L, D = x.shape
    assert L == packed["seq_len"]
    w_block, bias_block = packed["w_block"], packed["bias_block"]
    mask, fcw, fcb = packed["mask"], packed["fcw"], packed["fcb"]
    Lp, H4 = mask.shape
    Cp = fcw.shape[1]

    TB = max(8, min(block_b, _round_up(B, 8)))   # sublane-aligned output tiles
    Bp = _round_up(B, TB)

    xm = x.astype(w_block.dtype)                 # bf16 operands: halves x DMA bytes
    if Bp != B or Lp != L:
        xm = jnp.pad(xm, ((0, Bp - B), (0, Lp - L), (0, 0)))

    out = pl.pallas_call(
        _text_cnn_kernel,
        out_shape=jax.ShapeDtypeStruct((Bp, Cp), jnp.float32),
        grid_spec=pltpu.PrefetchScalarGridSpec(
            num_scalar_prefetch=0,
            grid=(Bp // TB,),
            in_specs=[
                pl.BlockSpec((TB, Lp, D), lambda b: (b, 0, 0)),
                # Constant index_maps: weights stay resident across grid steps.
                pl.BlockSpec(w_block.shape, lambda b: (0, 0)),
                pl.BlockSpec(bias_block.shape, lambda b: (0, 0)),
                pl.BlockSpec(mask.shape, lambda b: (0, 0)),
                pl.BlockSpec(fcw.shape, lambda b: (0, 0)),
                pl.BlockSpec(fcb.shape, lambda b: (0, 0)),
            ],
            out_specs=pl.BlockSpec((TB, Cp), lambda b: (b, 0)),
        ),
        compiler_params=pltpu.CompilerParams(
            dimension_semantics=("parallel",)),  # shards batch steps across TCs on v7x
    )(xm, w_block, bias_block, mask, fcw, fcb)

    return out[:B, :packed["num_classes"]]


def init_torch_params(key, d_model, hidden_dim, num_classes):
    """Deterministic params matching the PyTorch module's shapes & init scheme."""
    keys = jax.random.split(key, 2 * len(KERNEL_SIZES) + 2)
    p = {}

    def kaiming_uniform(k, shape, fan_in):       # relu gain
        bound = math.sqrt(2.0) * math.sqrt(3.0 / fan_in)
        return jax.random.uniform(k, shape, jnp.float32, -bound, bound)

    def default_bias(k, shape, fan_in):
        bound = 1.0 / math.sqrt(fan_in)
        return jax.random.uniform(k, shape, jnp.float32, -bound, bound)

    for bi, ksz in enumerate(KERNEL_SIZES):
        fan_in = d_model * ksz
        p[f"conv{bi}_w"] = kaiming_uniform(keys[2 * bi], (hidden_dim, d_model, ksz), fan_in)
        p[f"conv{bi}_b"] = default_bias(keys[2 * bi + 1], (hidden_dim,), fan_in)
        # BatchNorm1d eval-mode defaults of a fresh module.
        p[f"bn{bi}_gamma"] = jnp.ones((hidden_dim,), jnp.float32)
        p[f"bn{bi}_beta"] = jnp.zeros((hidden_dim,), jnp.float32)
        p[f"bn{bi}_mean"] = jnp.zeros((hidden_dim,), jnp.float32)
        p[f"bn{bi}_var"] = jnp.ones((hidden_dim,), jnp.float32)

    fan_in_fc = 4 * hidden_dim
    bound = math.sqrt(6.0 / (fan_in_fc + num_classes))    # xavier_uniform
    p["fc_w"] = jax.random.uniform(keys[-2], (num_classes, fan_in_fc),
                                   jnp.float32, -bound, bound)
    p["fc_b"] = default_bias(keys[-1], (num_classes,), fan_in_fc)
    return p


def reference_forward(x, tparams, eps=1e-5):
    """Pure-JAX f32 reference of Text_CNN.forward (eval mode)."""
    B, L, _ = x.shape
    pooled = []
    for bi, k in enumerate(KERNEL_SIZES):
        w = tparams[f"conv{bi}_w"]                        # (H, D, k)
        b = tparams[f"conv{bi}_b"]
        lo = L - k + 1
        y = jnp.zeros((B, lo, w.shape[0]), jnp.float32) + b
        for j in range(k):
            y = y + jnp.einsum("bld,hd->blh", x[:, j:j + lo, :], w[:, :, j])
        s = tparams[f"bn{bi}_gamma"] / jnp.sqrt(tparams[f"bn{bi}_var"] + eps)
        t = tparams[f"bn{bi}_beta"] - tparams[f"bn{bi}_mean"] * s
        y = jnp.maximum(y * s + t, 0.0)
        pooled.append(jnp.max(y, axis=1))
    pooled = jnp.concatenate(pooled, axis=-1)             # (B, 4H)
    return pooled @ tparams["fc_w"].T + tparams["fc_b"]


if __name__ == "__main__":
    B, L, D_MODEL, HIDDEN, NUM_CLASSES = 16, 16, 32, 32, 8

    key = jax.random.PRNGKey(0)
    kx, kp = jax.random.split(key)
    x = jax.random.normal(kx, (B, L, D_MODEL), jnp.float32)   # (B, L, d_model)

    tparams = init_torch_params(kp, D_MODEL, HIDDEN, NUM_CLASSES)
    packed = pack_params(tparams, L, D_MODEL, HIDDEN, NUM_CLASSES)

    out = text_cnn_forward(x, packed, block_b=8)
    out = jax.block_until_ready(out)

    assert out.shape == (B, NUM_CLASSES)
    assert bool(jnp.all(jnp.isfinite(out)))

    # bf16 matmul operands vs f32 reference -> loose tolerance.
    ref = reference_forward(x, tparams)
    assert bool(jnp.allclose(out, ref, atol=1e-1, rtol=1e-1)), \
        float(jnp.max(jnp.abs(out - ref)))

    print("KERNEL_OK")
</pallas_src>

<mosaic_0001>
module attributes {stable_mosaic.version = 11 : i64} {
  func.func @_text_cnn_kernel(%arg0: i32, %arg1: memref<8x16x32xbf16, #tpu.memory_space<vmem>>, %arg2: memref<160x128xbf16, #tpu.memory_space<vmem>>, %arg3: memref<1x128xf32, #tpu.memory_space<vmem>>, %arg4: memref<16x128xf32, #tpu.memory_space<vmem>>, %arg5: memref<128x128xbf16, #tpu.memory_space<vmem>>, %arg6: memref<1x128xf32, #tpu.memory_space<vmem>>, %arg7: memref<8x128xf32, #tpu.memory_space<vmem>>) attributes {dimension_semantics = [#tpu.dimension_semantics<parallel>], iteration_bounds = array<i64: 2>, scalar_prefetch = 0 : i64, scratch_operands = 0 : i64, tpu.core_type = #tpu.core_type<tc>, window_params = [{transform_indices = @transform_0, window_bounds = array<i64: 8, 16, 32>}, {pipeline_mode = #tpu.pipeline_mode<synchronous>, transform_indices = @transform_1, window_bounds = array<i64: 160, 128>}, {pipeline_mode = #tpu.pipeline_mode<synchronous>, transform_indices = @transform_2, window_bounds = array<i64: 1, 128>}, {pipeline_mode = #tpu.pipeline_mode<synchronous>, transform_indices = @transform_3, window_bounds = array<i64: 16, 128>}, {pipeline_mode = #tpu.pipeline_mode<synchronous>, transform_indices = @transform_4, window_bounds = array<i64: 128, 128>}, {pipeline_mode = #tpu.pipeline_mode<synchronous>, transform_indices = @transform_5, window_bounds = array<i64: 1, 128>}, {transform_indices = @transform_6, window_bounds = array<i64: 8, 128>}]} {
    %c0 = arith.constant 0 : index
    %c0_0 = arith.constant 0 : index
    %c0_1 = arith.constant 0 : index
    %0 = vector.load %arg1[%c0, %c0_0, %c0_1] : memref<8x16x32xbf16, #tpu.memory_space<vmem>>, vector<8x16x32xbf16>
    %1 = vector.shape_cast %0 : vector<8x16x32xbf16> to vector<128x32xbf16>
    %2 = vector.extract_strided_slice %1 {offsets = [1, 0], sizes = [127, 32], strides = [1, 1]} : vector<128x32xbf16> to vector<127x32xbf16>
    %cst = arith.constant 0.000000e+00 : bf16
    %3 = vector.broadcast %cst : bf16 to vector<1x32xbf16>
    %4 = tpu.concatenate %2, %3 in 0 : vector<127x32xbf16>, vector<1x32xbf16> -> vector<128x32xbf16>
    %5 = vector.extract_strided_slice %1 {offsets = [2, 0], sizes = [126, 32], strides = [1, 1]} : vector<128x32xbf16> to vector<126x32xbf16>
    %cst_2 = arith.constant 0.000000e+00 : bf16
    %6 = vector.broadcast %cst_2 : bf16 to vector<2x32xbf16>
    %7 = tpu.concatenate %5, %6 in 0 : vector<126x32xbf16>, vector<2x32xbf16> -> vector<128x32xbf16>
    %8 = vector.extract_strided_slice %1 {offsets = [3, 0], sizes = [125, 32], strides = [1, 1]} : vector<128x32xbf16> to vector<125x32xbf16>
    %cst_3 = arith.constant 0.000000e+00 : bf16
    %9 = vector.broadcast %cst_3 : bf16 to vector<3x32xbf16>
    %10 = tpu.concatenate %8, %9 in 0 : vector<125x32xbf16>, vector<3x32xbf16> -> vector<128x32xbf16>
    %11 = vector.extract_strided_slice %1 {offsets = [4, 0], sizes = [124, 32], strides = [1, 1]} : vector<128x32xbf16> to vector<124x32xbf16>
    %cst_4 = arith.constant 0.000000e+00 : bf16
    %12 = vector.broadcast %cst_4 : bf16 to vector<4x32xbf16>
    %13 = tpu.concatenate %11, %12 in 0 : vector<124x32xbf16>, vector<4x32xbf16> -> vector<128x32xbf16>
    %14 = tpu.concatenate %1, %4, %7, %10, %13 in 1 : vector<128x32xbf16>, vector<128x32xbf16>, vector<128x32xbf16>, vector<128x32xbf16>, vector<128x32xbf16> -> vector<128x160xbf16>
    %c0_5 = arith.constant 0 : index
    %c0_6 = arith.constant 0 : index
    %15 = vector.load %arg2[%c0_5, %c0_6] : memref<160x128xbf16, #tpu.memory_space<vmem>>, vector<160x128xbf16>
    %cst_7 = arith.constant dense<0.000000e+00> : vector<128x128xf32>
    %16 = tpu.matmul %14, %15, %cst_7 {dimension_numbers = #tpu.dot_dimension_numbers<[1], [0], [0], [1], [0, 0, 1, 1], [], []>} : vector<128x160xbf16>, vector<160x128xbf16>, vector<128x128xf32> -> vector<128x128xf32>
    %c0_8 = arith.constant 0 : index
    %c0_9 = arith.constant 0 : index
    %17 = vector.load %arg3[%c0_8, %c0_9] : memref<1x128xf32, #tpu.memory_space<vmem>>, vector<1x128xf32>
    %18 = vector.broadcast %17 : vector<1x128xf32> to vector<128x128xf32>
    %19 = arith.addf %16, %18 : vector<128x128xf32>
    %cst_10 = arith.constant 0.000000e+00 : f32
    %20 = vector.broadcast %cst_10 : f32 to vector<128x128xf32>
    %21 = arith.maximumf %19, %20 : vector<128x128xf32>
    %22 = vector.shape_cast %21 : vector<128x128xf32> to vector<8x16x128xf32>
    %c0_11 = arith.constant 0 : index
    %c0_12 = arith.constant 0 : index
    %23 = vector.load %arg4[%c0_11, %c0_12] : memref<16x128xf32, #tpu.memory_space<vmem>>, vector<16x128xf32>
    %24 = vector.shape_cast %23 : vector<16x128xf32> to vector<1x16x128xf32>
    %25 = vector.broadcast %24 : vector<1x16x128xf32> to vector<8x16x128xf32>
    %26 = arith.mulf %22, %25 : vector<8x16x128xf32>
    %cst_13 = arith.constant dense<0xFF800000> : vector<8x128xf32>
    %27 = vector.multi_reduction <maximumf>, %26, %cst_13 [1] : vector<8x16x128xf32> to vector<8x128xf32>
    %28 = arith.truncf %27 : vector<8x128xf32> to vector<8x128xbf16>
    %c0_14 = arith.constant 0 : index
    %c0_15 = arith.constant 0 : index
    %29 = vector.load %arg5[%c0_14, %c0_15] : memref<128x128xbf16, #tpu.memory_space<vmem>>, vector<128x128xbf16>
    %cst_16 = arith.constant dense<0.000000e+00> : vector<8x128xf32>
    %30 = tpu.matmul %28, %29, %cst_16 {dimension_numbers = #tpu.dot_dimension_numbers<[1], [0], [0], [1], [0, 0, 1, 1], [], []>} : vector<8x128xbf16>, vector<128x128xbf16>, vector<8x128xf32> -> vector<8x128xf32>
    %c0_17 = arith.constant 0 : index
    %c0_18 = arith.constant 0 : index
    %31 = vector.load %arg6[%c0_17, %c0_18] : memref<1x128xf32, #tpu.memory_space<vmem>>, vector<1x128xf32>
    %32 = vector.broadcast %31 : vector<1x128xf32> to vector<8x128xf32>
    %33 = arith.addf %30, %32 : vector<8x128xf32>
    %c0_19 = arith.constant 0 : index
    %c0_20 = arith.constant 0 : index
    %34 = vector.load %arg7[%c0_19, %c0_20] : memref<8x128xf32, #tpu.memory_space<vmem>>, vector<8x128xf32>
    tpu.vector_store %arg7[%c0_19, %c0_20], %33 {strides = array<i32>} : memref<8x128xf32, #tpu.memory_space<vmem>>, vector<8x128xf32>,
    return
  }
  func.func @transform_0(%arg0: i32) -> (i32, i32, i32) {
    %c0_i32 = arith.constant 0 : i32
    %c0_i32_0 = arith.constant 0 : i32
    %c0_i32_1 = arith.constant 0 : i32
    return %arg0, %c0_i32, %c0_i32_0 : i32, i32, i32
  }
  func.func @transform_1(%arg0: i32) -> (i32, i32) {
    %c0_i32 = arith.constant 0 : i32
    %c0_i32_0 = arith.constant 0 : i32
    %c0_i32_1 = arith.constant 0 : i32
    return %c0_i32, %c0_i32_0 : i32, i32
  }
  func.func @transform_2(%arg0: i32) -> (i32, i32) {
    %c0_i32 = arith.constant 0 : i32
    %c0_i32_0 = arith.constant 0 : i32
    %c0_i32_1 = arith.constant 0 : i32
    return %c0_i32, %c0_i32_0 : i32, i32
  }
  func.func @transform_3(%arg0: i32) -> (i32, i32) {
    %c0_i32 = arith.constant 0 : i32
    %c0_i32_0 = arith.constant 0 : i32
    %c0_i32_1 = arith.constant 0 : i32
    return %c0_i32, %c0_i32_0 : i32, i32
  }
  func.func @transform_4(%arg0: i32) -> (i32, i32) {
    %c0_i32 = arith.constant 0 : i32
    %c0_i32_0 = arith.constant 0 : i32
    %c0_i32_1 = arith.constant 0 : i32
    return %c0_i32, %c0_i32_0 : i32, i32
  }
  func.func @transform_5(%arg0: i32) -> (i32, i32) {
    %c0_i32 = arith.constant 0 : i32
    %c0_i32_0 = arith.constant 0 : i32
    %c0_i32_1 = arith.constant 0 : i32
    return %c0_i32, %c0_i32_0 : i32, i32
  }
  func.func @transform_6(%arg0: i32) -> (i32, i32) {
    %c0_i32 = arith.constant 0 : i32
    %c0_i32_0 = arith.constant 0 : i32
    return %arg0, %c0_i32 : i32, i32
  }
}

</mosaic_0001>

<llo_original>
// kernel: tpu_custom_call.1
$region0: #{tpu_custom_call.1}
  #allocation0 [shape = 'u32[]', space=smem, size = 0x4, offset = 0x4, fixed_abs, tag = 'smem constant byte address 0x4 - core index']
  #allocation1 [shape = 'u32[72,128]{1,0:T(1,128)}', space=vmem, size = 0x9000, scoped, tag = 'internal scratch']
  %s0 = inlined_call_operand.hbm [shape: bf16[16,16,32], index: 0, kind: input, shape index: {}]
  %s1 = inlined_call_operand.hbm [shape: bf16[160,128], index: 1, kind: input, shape index: {}]
  %s2 = inlined_call_operand.vmem [shape: f32[1,128], index: 2, kind: input, shape index: {}]
  %s3 = inlined_call_operand.hbm [shape: f32[16,128], index: 3, kind: input, shape index: {}]
  %s4 = inlined_call_operand.hbm [shape: bf16[128,128], index: 4, kind: input, shape index: {}]
  %s5 = inlined_call_operand.vmem [shape: f32[1,128], index: 5, kind: input, shape index: {}]
  %s6 = inlined_call_operand.hbm [shape: f32[16,128], index: 6, kind: output, shape index: {}]
  %s7 = sld [smem:[#allocation0]]
  $region73: #{tpu_custom_call.1} parent=0
    _
  %s9 = ssub.s32 1, %s7
  %s10 = scalar_select 0, %s9, %s7
  $region1: #{tpu_custom_call.1} parent=0
    #allocation2 [shape = 'u8[65536]{0}', space=vmem, size = 0x10000, scoped, tag = 'input window, operand 0']
    #allocation3 [shape = 's32[2]{0}', space=sflag, size = 0x8, scoped, tag = 'scoped memory for tpu_custom_call.1']
    #allocation4 [shape = 's32[2]{0}', space=sflag, size = 0x8, scoped, tag = 'scoped memory for tpu_custom_call.1']
    #allocation5 [shape = 'u8[40960]{0}', space=vmem, size = 0xa000, scoped, tag = 'input window, operand 1, single buffered']
    #allocation6 [shape = 's32[1]{0}', space=sflag, size = 0x4, scoped, tag = 'scoped memory for tpu_custom_call.1']
    #allocation7 [shape = 'u8[8192]{0}', space=vmem, size = 0x2000, scoped, tag = 'input window, operand 3, single buffered']
    #allocation8 [shape = 'u8[32768]{0}', space=vmem, size = 0x8000, scoped, tag = 'input window, operand 4, single buffered']
    #allocation9 [shape = 's32[1]{0}', space=sflag, size = 0x4, scoped, tag = 'scoped memory for tpu_custom_call.1']
    #allocation10 [shape = 'u8[8192]{0}', space=vmem, size = 0x2000, scoped, tag = 'output window, operand 0']
    %11 = vsyncpa [#allocation3], 0
    %s12 = scalar_lea.sflag [#allocation3], 1
    %13 = vsyncpa %s12, 0
    %14 = vsyncpa [#allocation6], 0
    %15 = vsyncpa [#allocation9], 0
    %16 = vsyncpa [#allocation4], 0
    %s17 = scalar_lea.sflag [#allocation4], 1
    %18 = vsyncpa %s17, 0
    loop: start=0, step=1, limit=4
    $region2: #{tpu_custom_call.1} parent=1 // loop_pre_header
      _
    $region3: #{tpu_custom_call.1} parent=1 // loop_header
      %s20 = sphi 0, %s24
      %p21 = scmp.ge.s32.totalorder %s20, 4
      %s30 = sphi 0, %s32
      %s33 = sphi 0, %s30
      %s34 = sphi 0, %s33
      %s50 = sphi 0, %s34
      %s54 = sphi 0, %s54
      %s56 = sphi 0, %s54
      %s57 = sphi 0, %s56
      %s71 = sphi 0, %s57
      %s75 = sphi 0, %s75
      %s77 = sphi 0, %s75
      %s78 = sphi 0, %s77
      %s92 = sphi 0, %s78
      %s96 = sphi 0, %s96
      %s98 = sphi 0, %s96
      %s99 = sphi 0, %s98
      %s113 = sphi 0, %s99
      %s117 = sphi 0, %s117
      %s119 = sphi 0, %s117
      %s120 = sphi 0, %s119
      %s134 = sphi 0, %s120
      %s138 = sphi 0, %s138
      %s140 = sphi 0, %s138
      %s141 = sphi 0, %s140
      %s155 = sphi 0, %s141
      %s161 = sphi 0, %s163
      %s164 = sphi 0, %s161
      %s165 = sphi 0, %s164
      %s181 = sphi 0, %s165
    $region4: #{tpu_custom_call.1} parent=1 // loop_header_branch
      %23 = sbr.rel (%p21) target = $region8
    $region5: #{tpu_custom_call.1} parent=1 // loop_body
      %s25 = ssub.s32 %s20, 1
      %s26 = ssub.s32 %s20, 2
      %s27 = sadd.s32 %s20, 1
      %s28 = ssub.s32 %s20, %s27
      %p29 = scmp.eq.s32.totalorder %s28, 0
      %s31 = sadd.s32 %s30, 1
      %s32 = scalar_select %p29, %s30, %s31
      %p35 = pneg %p29
      %p36 = scmp.eq.s32.totalorder %s20, 1
      %p37 = por %p35, %p36
      %p38 = scmp.ne.s32.totalorder %s30, %s33
      %p39 = scmp.eq.s32.totalorder %s20, 0
      %p40 = por %p38, %p39
      %p41 = scmp.ne.s32.totalorder %s30, %s33
      %p42 = scmp.eq.s32.totalorder %s25, 1
      %p43 = por %p41, %p42
      %p44 = scmp.ne.s32.totalorder %s33, %s34
      %p45 = scmp.eq.s32.totalorder %s25, 0
      %p46 = por %p44, %p45
      %p47 = scmp.ne.s32.totalorder %s33, %s34
      %p48 = scmp.eq.s32.totalorder %s26, 1
      %p49 = por %p47, %p48
      %p51 = scmp.ne.s32.totalorder %s34, %s50
      %p52 = scmp.eq.s32.totalorder %s26, 0
      %p53 = por %p51, %p52
      %s55 = sadd.s32 %s54, 1
      %p58 = scmp.eq.s32.totalorder %s20, 1
      %p59 = scmp.ne.s32.totalorder %s54, %s56
      %p60 = scmp.eq.s32.totalorder %s20, 0
      %p61 = por %p59, %p60
      %p62 = scmp.ne.s32.totalorder %s54, %s56
      %p63 = scmp.eq.s32.totalorder %s25, 1
      %p64 = por %p62, %p63
      %p65 = scmp.ne.s32.totalorder %s56, %s57
      %p66 = scmp.eq.s32.totalorder %s25, 0
      %p67 = por %p65, %p66
      %p68 = scmp.ne.s32.totalorder %s56, %s57
      %p69 = scmp.eq.s32.totalorder %s26, 1
      %p70 = por %p68, %p69
      %p72 = scmp.ne.s32.totalorder %s57, %s71
      %p73 = scmp.eq.s32.totalorder %s26, 0
      %p74 = por %p72, %p73
      %s76 = sadd.s32 %s75, 1
      %p79 = scmp.eq.s32.totalorder %s20, 1
      %p80 = scmp.ne.s32.totalorder %s75, %s77
      %p81 = scmp.eq.s32.totalorder %s20, 0
      %p82 = por %p80, %p81
      %p83 = scmp.ne.s32.totalorder %s75, %s77
      %p84 = scmp.eq.s32.totalorder %s25, 1
      %p85 = por %p83, %p84
      %p86 = scmp.ne.s32.totalorder %s77, %s78
      %p87 = scmp.eq.s32.totalorder %s25, 0
      %p88 = por %p86, %p87
      %p89 = scmp.ne.s32.totalorder %s77, %s78
      %p90 = scmp.eq.s32.totalorder %s26, 1
      %p91 = por %p89, %p90
      %p93 = scmp.ne.s32.totalorder %s78, %s92
      %p94 = scmp.eq.s32.totalorder %s26, 0
      %p95 = por %p93, %p94
      %s97 = sadd.s32 %s96, 1
      %p100 = scmp.eq.s32.totalorder %s20, 1
      %p101 = scmp.ne.s32.totalorder %s96, %s98
      %p102 = scmp.eq.s32.totalorder %s20, 0
      %p103 = por %p101, %p102
      %p104 = scmp.ne.s32.totalorder %s96, %s98
      %p105 = scmp.eq.s32.totalorder %s25, 1
      %p106 = por %p104, %p105
      %p107 = scmp.ne.s32.totalorder %s98, %s99
      %p108 = scmp.eq.s32.totalorder %s25, 0
      %p109 = por %p107, %p108
      %p110 = scmp.ne.s32.totalorder %s98, %s99
      %p111 = scmp.eq.s32.totalorder %s26, 1
      %p112 = por %p110, %p111
      %p114 = scmp.ne.s32.totalorder %s99, %s113
      %p115 = scmp.eq.s32.totalorder %s26, 0
      %p116 = por %p114, %p115
      %s118 = sadd.s32 %s117, 1
      %p121 = scmp.eq.s32.totalorder %s20, 1
      %p122 = scmp.ne.s32.totalorder %s117, %s119
      %p123 = scmp.eq.s32.totalorder %s20, 0
      %p124 = por %p122, %p123
      %p125 = scmp.ne.s32.totalorder %s117, %s119
      %p126 = scmp.eq.s32.totalorder %s25, 1
      %p127 = por %p125, %p126
      %p128 = scmp.ne.s32.totalorder %s119, %s120
      %p129 = scmp.eq.s32.totalorder %s25, 0
      %p130 = por %p128, %p129
      %p131 = scmp.ne.s32.totalorder %s119, %s120
      %p132 = scmp.eq.s32.totalorder %s26, 1
      %p133 = por %p131, %p132
      %p135 = scmp.ne.s32.totalorder %s120, %s134
      %p136 = scmp.eq.s32.totalorder %s26, 0
      %p137 = por %p135, %p136
      %s139 = sadd.s32 %s138, 1
      %p142 = scmp.eq.s32.totalorder %s20, 1
      %p143 = scmp.ne.s32.totalorder %s138, %s140
      %p144 = scmp.eq.s32.totalorder %s20, 0
      %p145 = por %p143, %p144
      %p146 = scmp.ne.s32.totalorder %s138, %s140
      %p147 = scmp.eq.s32.totalorder %s25, 1
      %p148 = por %p146, %p147
      %p149 = scmp.ne.s32.totalorder %s140, %s141
      %p150 = scmp.eq.s32.totalorder %s25, 0
      %p151 = por %p149, %p150
      %p152 = scmp.ne.s32.totalorder %s140, %s141
      %p153 = scmp.eq.s32.totalorder %s26, 1
      %p154 = por %p152, %p153
      %p156 = scmp.ne.s32.totalorder %s141, %s155
      %p157 = scmp.eq.s32.totalorder %s26, 0
      %p158 = por %p156, %p157
      %s159 = ssub.s32 %s20, %s27
      %p160 = scmp.eq.s32.totalorder %s159, 0
      %s162 = sadd.s32 %s161, 1
      %s163 = scalar_select %p160, %s161, %s162
      %p166 = pneg %p160
      %p167 = scmp.eq.s32.totalorder %s20, 1
      %p168 = por %p166, %p167
      %p169 = scmp.ne.s32.totalorder %s161, %s164
      %p170 = scmp.eq.s32.totalorder %s20, 0
      %p171 = por %p169, %p170
      %p172 = scmp.ne.s32.totalorder %s161, %s164
      %p173 = scmp.eq.s32.totalorder %s25, 1
      %p174 = por %p172, %p173
      %p175 = scmp.ne.s32.totalorder %s164, %s165
      %p176 = scmp.eq.s32.totalorder %s25, 0
      %p177 = por %p175, %p176
      %p178 = scmp.ne.s32.totalorder %s164, %s165
      %p179 = scmp.eq.s32.totalorder %s26, 1
      %p180 = por %p178, %p179
      %p182 = scmp.ne.s32.totalorder %s165, %s181
      %p183 = scmp.eq.s32.totalorder %s26, 0
      %p184 = por %p182, %p183
      %p185 = scmp.le.s32.totalorder 1, %s20
      %p186 = scmp.lt.s32.totalorder %s20, 3
      %p187 = pnand %p185, %p186
      %p188 = pneg %p187
      // Predicated region
      $region9: #{tpu_custom_call.1} parent=5 // pred_check
        _
      $region10: #{tpu_custom_call.1} parent=5 // pred_check_branch
        %190 = sbr.rel (%p187) target = $region12
      $region11: #{tpu_custom_call.1} parent=5 // pred_region
        %s191 = ssub.s32 %s20, 1
        // Predicated region
        $region13: #{tpu_custom_call.1} parent=11 // pred_check
          %p192 = pneg %p67
        $region14: #{tpu_custom_call.1} parent=11 // pred_check_branch
          %194 = sbr.rel (%p192) target = $region16
        $region15: #{tpu_custom_call.1} parent=11 // pred_region
          %196 = vsyncadd [#allocation6], 0
          %s197 = sshll.u32 %s1, 4
          %s198 = int_to_ptr.hbm [resolvable:$true] %s197
          %s199 = sshll.u32 [#allocation5], 4
          %s200 = int_to_ptr.vmem [resolvable:$true] %s199
          %205 = dma.hbm_to_vmem [thread:$0]  %s198, 1280, %s200, [#allocation6], 64, 64, 4
        $region16: #{tpu_custom_call.1} parent=11 // pred_fallthru
          _
        // Predicated region
        $region17: #{tpu_custom_call.1} parent=11 // pred_check
          %p206 = pneg %p88
        $region18: #{tpu_custom_call.1} parent=11 // pred_check_branch
          %208 = sbr.rel (%p206) target = $region20
        $region19: #{tpu_custom_call.1} parent=11 // pred_region
          _
        $region20: #{tpu_custom_call.1} parent=11 // pred_fallthru
          _
        // Predicated region
        $region21: #{tpu_custom_call.1} parent=11 // pred_check
          %p209 = pneg %p109
        $region22: #{tpu_custom_call.1} parent=11 // pred_check_branch
          %211 = sbr.rel (%p209) target = $region24
        $region23: #{tpu_custom_call.1} parent=11 // pred_region
          %213 = vsyncadd [#allocation6], 0
          %s214 = sshll.u32 %s3, 4
          %s215 = int_to_ptr.hbm [resolvable:$true] %s214
          %s216 = sshll.u32 [#allocation7], 4
          %s217 = int_to_ptr.vmem [resolvable:$true] %s216
          %222 = dma.hbm_to_vmem [thread:$0]  %s215, 256, %s217, [#allocation6], 128, 128, 8
        $region24: #{tpu_custom_call.1} parent=11 // pred_fallthru
          _
        // Predicated region
        $region25: #{tpu_custom_call.1} parent=11 // pred_check
          %p223 = pneg %p130
        $region26: #{tpu_custom_call.1} parent=11 // pred_check_branch
          %225 = sbr.rel (%p223) target = $region28
        $region27: #{tpu_custom_call.1} parent=11 // pred_region
          %227 = vsyncadd [#allocation9], 0
          %s228 = sshll.u32 %s4, 4
          %s229 = int_to_ptr.hbm [resolvable:$true] %s228
          %s230 = sshll.u32 [#allocation8], 4
          %s231 = int_to_ptr.vmem [resolvable:$true] %s230
          %236 = dma.hbm_to_vmem [thread:$0]  %s229, 1024, %s231, [#allocation9], 64, 64, 4
        $region28: #{tpu_custom_call.1} parent=11 // pred_fallthru
          _
        // Predicated region
        $region29: #{tpu_custom_call.1} parent=11 // pred_check
          %p237 = pneg %p151
        $region30: #{tpu_custom_call.1} parent=11 // pred_check_branch
          %239 = sbr.rel (%p237) target = $region32
        $region31: #{tpu_custom_call.1} parent=11 // pred_region
          _
        $region32: #{tpu_custom_call.1} parent=11 // pred_fallthru
          _
      $region12: #{tpu_custom_call.1} parent=5 // pred_fallthru
        _
      %p240 = scmp.lt.s32.totalorder %s20, 2
      // Predicated region
      $region33: #{tpu_custom_call.1} parent=5 // pred_check
        %p241 = pneg %p240
      $region34: #{tpu_custom_call.1} parent=5 // pred_check_branch
        %243 = sbr.rel (%p241) target = $region36
      $region35: #{tpu_custom_call.1} parent=5 // pred_region
        // Predicated region
        $region37: #{tpu_custom_call.1} parent=35 // pred_check
          %p244 = pneg %p40
        $region38: #{tpu_custom_call.1} parent=35 // pred_check_branch
          %246 = sbr.rel (%p244) target = $region40
        $region39: #{tpu_custom_call.1} parent=35 // pred_region
          %s247 = sand.u32 %s30, 1
          %s248 = scalar_lea.sflag [#allocation3], %s247
          %s249 = sand.u32 %s30, 1
          %s250 = smul.addr %s249, 64
          %s251 = scalar_lea.vmem [#allocation2], %s250
          %s252 = smul.u32 8, %s20
          %254 = vsyncadd %s248, 0
          %s255 = smul.addr %s252, 2
          %s256 = smul.addr %s255, 4
          %s257 = scalar_lea.hbm %s0, %s256
          %s258 = sshll.u32 %s257, 4
          %s259 = int_to_ptr.hbm [resolvable:$true] %s258
          %s260 = sshll.u32 %s251, 4
          %s261 = int_to_ptr.vmem [resolvable:$true] %s260
          %266 = dma.hbm_to_vmem [thread:$0]  %s259, 1024, %s261, %s248, 64, 64, 4
        $region40: #{tpu_custom_call.1} parent=35 // pred_fallthru
          _
      $region36: #{tpu_custom_call.1} parent=5 // pred_fallthru
        _
      %p267 = scmp.le.s32.totalorder 1, %s20
      %p268 = scmp.lt.s32.totalorder %s20, 3
      %p269 = pnand %p267, %p268
      %p270 = pneg %p269
      // Predicated region
      $region41: #{tpu_custom_call.1} parent=5 // pred_check
        _
      $region42: #{tpu_custom_call.1} parent=5 // pred_check_branch
        %272 = sbr.rel (%p269) target = $region44
      $region43: #{tpu_custom_call.1} parent=5 // pred_region
        %s273 = ssub.s32 %s20, 1
        %s274 = sand.u32 %s33, 1
        %s275 = scalar_lea.sflag [#allocation3], %s274
        %s276 = sand.u32 %s33, 1
        %s277 = smul.addr %s276, 64
        %s278 = scalar_lea.vmem [#allocation2], %s277
        // Predicated region
        $region45: #{tpu_custom_call.1} parent=43 // pred_check
          %p279 = pneg %p46
        $region46: #{tpu_custom_call.1} parent=43 // pred_check_branch
          %281 = sbr.rel (%p279) target = $region48
        $region47: #{tpu_custom_call.1} parent=43 // pred_region
          %283 = dma.done %s275, 1024
        $region48: #{tpu_custom_call.1} parent=43 // pred_fallthru
          _
        // Predicated region
        $region49: #{tpu_custom_call.1} parent=43 // pred_check
          %p284 = pneg %p67
        $region50: #{tpu_custom_call.1} parent=43 // pred_check_branch
          %286 = sbr.rel (%p284) target = $region52
        $region51: #{tpu_custom_call.1} parent=43 // pred_region
          %288 = dma.done [#allocation6], 1280
        $region52: #{tpu_custom_call.1} parent=43 // pred_fallthru
          _
        // Predicated region
        $region53: #{tpu_custom_call.1} parent=43 // pred_check
          %p289 = pneg %p109
        $region54: #{tpu_custom_call.1} parent=43 // pred_check_branch
          %291 = sbr.rel (%p289) target = $region56
        $region55: #{tpu_custom_call.1} parent=43 // pred_region
          %293 = dma.done [#allocation6], 256
        $region56: #{tpu_custom_call.1} parent=43 // pred_fallthru
          _
        // Predicated region
        $region57: #{tpu_custom_call.1} parent=43 // pred_check
          %p294 = pneg %p130
        $region58: #{tpu_custom_call.1} parent=43 // pred_check_branch
          %296 = sbr.rel (%p294) target = $region60
        $region59: #{tpu_custom_call.1} parent=43 // pred_region
          %298 = dma.done [#allocation9], 1024
        $region60: #{tpu_custom_call.1} parent=43 // pred_fallthru
          _
        %s299 = sand.u32 %s33, 1
        %s300 = scalar_lea.sflag [#allocation3], %s299
        %s301 = sand.u32 %s33, 1
        %s302 = smul.addr %s301, 64
        %s303 = scalar_lea.vmem [#allocation2], %s302
        %p304 = pneg %p46
        %p305 = pneg %p43
        %p306 = pneg %p67
        %p307 = pneg %p64
        %p308 = pneg %p88
        %p309 = pneg %p85
        %p310 = pneg %p109
        %p311 = pneg %p106
        %p312 = pneg %p130
        %p313 = pneg %p127
        %p314 = pneg %p151
        %p315 = pneg %p148
        %p316 = pneg %p177
        %p317 = pneg %p174
        %s318 = sand.u32 %s164, 1
        %s319 = scalar_lea.sflag [#allocation4], %s318
        %s320 = sand.u32 %s164, 1
        %s321 = smul.addr %s320, 8
        %s322 = scalar_lea.vmem [#allocation10], %s321
        %s323 = smul.u32 8, %s25
        %v325 = vld [vmem:[%s278] sm:$0xf]
        %v326 = vld [vmem:[%s278 + $0x4] sm:$0xf]
        %v327 = vld [vmem:[%s278 + $0x8] sm:$0xf]
        %v328 = vld [vmem:[%s278 + $0xc] sm:$0xf]
        %v329 = vld [vmem:[%s278 + $0x10] sm:$0xf]
        %v330 = vld [vmem:[%s278 + $0x14] sm:$0xf]
        %v331 = vld [vmem:[%s278 + $0x18] sm:$0xf]
        %v332 = vld [vmem:[%s278 + $0x1c] sm:$0xf]
        %v333 = vld [vmem:[%s278 + $0x20] sm:$0xf]
        %v334 = vld [vmem:[%s278 + $0x24] sm:$0xf]
        %v335 = vld [vmem:[%s278 + $0x28] sm:$0xf]
        %v336 = vld [vmem:[%s278 + $0x2c] sm:$0xf]
        %v337 = vld [vmem:[%s278 + $0x30] sm:$0xf]
        %v338 = vld [vmem:[%s278 + $0x34] sm:$0xf]
        %v339 = vld [vmem:[%s278 + $0x38] sm:$0xf]
        %v340 = vld [vmem:[%s278 + $0x3c] sm:$0xf]
        %v357 = vunpack.c.l.b16 %v325
        %v358 = vunpack.c.l.b16 %v326
        %v359 = vunpack.c.l.b16 %v327
        %v360 = vunpack.c.l.b16 %v328
        %v361 = vunpack.c.l.b16 %v329
        %v362 = vunpack.c.l.b16 %v330
        %v363 = vunpack.c.l.b16 %v331
        %v364 = vunpack.c.l.b16 %v332
        %v365 = vunpack.c.l.b16 %v333
        %v366 = vunpack.c.l.b16 %v334
        %v367 = vunpack.c.l.b16 %v335
        %v368 = vunpack.c.l.b16 %v336
        %v369 = vunpack.c.l.b16 %v337
        %v370 = vunpack.c.l.b16 %v338
        %v371 = vunpack.c.l.b16 %v339
        %v372 = vunpack.c.l.b16 %v340
        %v373 = vpack.c.b16 %v358, %v357
        %v374 = vpack.c.b16 %v360, %v359
        %v375 = vpack.c.b16 %v362, %v361
        %v376 = vpack.c.b16 %v364, %v363
        %v377 = vpack.c.b16 %v366, %v365
        %v378 = vpack.c.b16 %v368, %v367
        %v379 = vpack.c.b16 %v370, %v369
        %v380 = vpack.c.b16 %v372, %v371
        %vm381 = vsmask.f32 7424
        %v383 = vshrl.u32 %v373, 16
        %v385 = vshll.u32 %v373, 16
        %v387 = vrot.slane %v385, 1
        %v388 = vor.u32 %v383, %v387
        %v390 = vshll.u32 %v374, 16
        %v392 = vrot.slane %v390, 1
        %v393 = vsel %vm381, %v388, %v392
        %v394 = vshrl.u32 %v374, 16
        %v396 = vor.u32 %v394, %v392
        %v398 = vshll.u32 %v375, 16
        %v400 = vrot.slane %v398, 1
        %v401 = vsel %vm381, %v396, %v400
        %v402 = vshrl.u32 %v375, 16
        %v404 = vor.u32 %v402, %v400
        %v406 = vshll.u32 %v376, 16
        %v408 = vrot.slane %v406, 1
        %v409 = vsel %vm381, %v404, %v408
        %v410 = vshrl.u32 %v376, 16
        %v412 = vor.u32 %v410, %v408
        %v414 = vshll.u32 %v377, 16
        %v416 = vrot.slane %v414, 1
        %v417 = vsel %vm381, %v412, %v416
        %v418 = vshrl.u32 %v377, 16
        %v420 = vor.u32 %v418, %v416
        %v422 = vshll.u32 %v378, 16
        %v424 = vrot.slane %v422, 1
        %v425 = vsel %vm381, %v420, %v424
        %v426 = vshrl.u32 %v378, 16
        %v428 = vor.u32 %v426, %v424
        %v430 = vshll.u32 %v379, 16
        %v432 = vrot.slane %v430, 1
        %v433 = vsel %vm381, %v428, %v432
        %v434 = vshrl.u32 %v379, 16
        %v436 = vor.u32 %v434, %v432
        %v438 = vshll.u32 %v380, 16
        %v440 = vrot.slane %v438, 1
        %v441 = vsel %vm381, %v436, %v440
        %v442 = vshrl.u32 %v380, 16
        %v444 = vor.u32 %v442, %v440
        %vm446 = vcmask 1047552
        %vm447 = vmand %vm446, %vm381
        %v448 = vsel %vm447, %v444, 0
        %vm449 = vcmask 1046528
        %v450 = vrot.slane %v373, 1
        %v451 = vrot.slane %v374, 1
        %v452 = vsel %vm449, %v450, %v451
        %v453 = vrot.slane %v375, 1
        %v454 = vsel %vm449, %v451, %v453
        %v455 = vrot.slane %v376, 1
        %v456 = vsel %vm449, %v453, %v455
        %v457 = vrot.slane %v377, 1
        %v458 = vsel %vm449, %v455, %v457
        %v459 = vrot.slane %v378, 1
        %v460 = vsel %vm449, %v457, %v459
        %v461 = vrot.slane %v379, 1
        %v462 = vsel %vm449, %v459, %v461
        %v463 = vrot.slane %v380, 1
        %v464 = vsel %vm449, %v461, %v463
        %vm465 = vcmask 1046528
        %v468 = vsel %vm465, %v463, 0
        %vm469 = vsmask.f32 6400
        %v470 = vrot.slane %v383, 1
        %v471 = vrot.slane %v385, 2
        %v472 = vor.u32 %v470, %v471
        %v473 = vrot.slane %v394, 1
        %v474 = vrot.slane %v390, 2
        %v475 = vor.u32 %v473, %v474
        %v476 = vsel %vm469, %v472, %v475
        %v477 = vrot.slane %v402, 1
        %v478 = vrot.slane %v398, 2
        %v479 = vor.u32 %v477, %v478
        %v480 = vsel %vm469, %v475, %v479
        %v481 = vrot.slane %v410, 1
        %v482 = vrot.slane %v406, 2
        %v483 = vor.u32 %v481, %v482
        %v484 = vsel %vm469, %v479, %v483
        %v485 = vrot.slane %v418, 1
        %v486 = vrot.slane %v414, 2
        %v487 = vor.u32 %v485, %v486
        %v488 = vsel %vm469, %v483, %v487
        %v489 = vrot.slane %v426, 1
        %v490 = vrot.slane %v422, 2
        %v491 = vor.u32 %v489, %v490
        %v492 = vsel %vm469, %v487, %v491
        %v493 = vrot.slane %v434, 1
        %v494 = vrot.slane %v430, 2
        %v495 = vor.u32 %v493, %v494
        %v496 = vsel %vm469, %v491, %v495
        %v497 = vrot.slane %v442, 1
        %v498 = vrot.slane %v438, 2
        %v499 = vor.u32 %v497, %v498
        %v500 = vsel %vm469, %v495, %v499
        %vm502 = vmand %vm449, %vm469
        %v503 = vsel %vm502, %v499, 0
        %vm504 = vcmask 1045504
        %v505 = vrot.slane %v373, 2
        %v506 = vrot.slane %v374, 2
        %v507 = vsel %vm504, %v505, %v506
        %v508 = vrot.slane %v375, 2
        %v509 = vsel %vm504, %v506, %v508
        %v510 = vrot.slane %v376, 2
        %v511 = vsel %vm504, %v508, %v510
        %v512 = vrot.slane %v377, 2
        %v513 = vsel %vm504, %v510, %v512
        %v514 = vrot.slane %v378, 2
        %v515 = vsel %vm504, %v512, %v514
        %v516 = vrot.slane %v379, 2
        %v517 = vsel %vm504, %v514, %v516
        %v518 = vrot.slane %v380, 2
        %v519 = vsel %vm504, %v516, %v518
        %vm520 = vcmask 1045504
        %v522 = vsel %vm520, %v518, 0
        %524 = vrot.lane.b32.xlu0 %v393, 32
        %v525 = vpop.permute.xlu0 %524
        %526 = vrot.lane.b32.xlu0 %v401, 32
        %v527 = vpop.permute.xlu0 %526
        %528 = vrot.lane.b32.xlu0 %v409, 32
        %v529 = vpop.permute.xlu0 %528
        %530 = vrot.lane.b32.xlu0 %v417, 32
        %v531 = vpop.permute.xlu0 %530
        %532 = vrot.lane.b32.xlu0 %v425, 32
        %v533 = vpop.permute.xlu0 %532
        %534 = vrot.lane.b32.xlu0 %v433, 32
        %v535 = vpop.permute.xlu0 %534
        %536 = vrot.lane.b32.xlu0 %v441, 32
        %v537 = vpop.permute.xlu0 %536
        %538 = vrot.lane.b32.xlu0 %v448, 32
        %v539 = vpop.permute.xlu0 %538
        %541 = vrot.lane.b32.xlu0 %v452, 64
        %v542 = vpop.permute.xlu0 %541
        %543 = vrot.lane.b32.xlu0 %v454, 64
        %v544 = vpop.permute.xlu0 %543
        %545 = vrot.lane.b32.xlu0 %v456, 64
        %v546 = vpop.permute.xlu0 %545
        %547 = vrot.lane.b32.xlu0 %v458, 64
        %v548 = vpop.permute.xlu0 %547
        %549 = vrot.lane.b32.xlu0 %v460, 64
        %v550 = vpop.permute.xlu0 %549
        %551 = vrot.lane.b32.xlu0 %v462, 64
        %v552 = vpop.permute.xlu0 %551
        %553 = vrot.lane.b32.xlu0 %v464, 64
        %v554 = vpop.permute.xlu0 %553
        %555 = vrot.lane.b32.xlu0 %v468, 64
        %v556 = vpop.permute.xlu0 %555
        %558 = vrot.lane.b32.xlu0 %v476, 96
        %v559 = vpop.permute.xlu0 %558
        %560 = vrot.lane.b32.xlu0 %v480, 96
        %v561 = vpop.permute.xlu0 %560
        %562 = vrot.lane.b32.xlu0 %v484, 96
        %v563 = vpop.permute.xlu0 %562
        %564 = vrot.lane.b32.xlu0 %v488, 96
        %v565 = vpop.permute.xlu0 %564
        %566 = vrot.lane.b32.xlu0 %v492, 96
        %v567 = vpop.permute.xlu0 %566
        %568 = vrot.lane.b32.xlu0 %v496, 96
        %v569 = vpop.permute.xlu0 %568
        %570 = vrot.lane.b32.xlu0 %v500, 96
        %v571 = vpop.permute.xlu0 %570
        %572 = vrot.lane.b32.xlu0 %v503, 96
        %v573 = vpop.permute.xlu0 %572
        %vm574 = vcmask 261120
        %v576 = vsel %vm574, %v373, %v525
        %v578 = vsel %vm574, %v374, %v527
        %v580 = vsel %vm574, %v375, %v529
        %v582 = vsel %vm574, %v376, %v531
        %v584 = vsel %vm574, %v377, %v533
        %v586 = vsel %vm574, %v378, %v535
        %v588 = vsel %vm574, %v379, %v537
        %v590 = vsel %vm574, %v380, %v539
        %vm591 = vcmask 523264
        %v593 = vsel %vm591, %v576, %v542
        %v595 = vsel %vm591, %v578, %v544
        %v597 = vsel %vm591, %v580, %v546
        %v599 = vsel %vm591, %v582, %v548
        %v601 = vsel %vm591, %v584, %v550
        %v603 = vsel %vm591, %v586, %v552
        %v605 = vsel %vm591, %v588, %v554
        %v607 = vsel %vm591, %v590, %v556
        %vm608 = vcmask 785408
        %v610 = vsel %vm608, %v593, %v559
        %v613 = vsel %vm608, %v595, %v561
        %v616 = vsel %vm608, %v597, %v563
        %v619 = vsel %vm608, %v599, %v565
        %v622 = vsel %vm608, %v601, %v567
        %v625 = vsel %vm608, %v603, %v569
        %v628 = vsel %vm608, %v605, %v571
        %v631 = vsel %vm608, %v607, %v573
        %v633 = vld [vmem:[#allocation5] sm:$0xf]
        %v634 = vld [vmem:[#allocation5 + $0x4] sm:$0xf]
        %v635 = vld [vmem:[#allocation5 + $0x8] sm:$0xf]
        %v636 = vld [vmem:[#allocation5 + $0xc] sm:$0xf]
        %v637 = vld [vmem:[#allocation5 + $0x10] sm:$0xf]
        %v638 = vld [vmem:[#allocation5 + $0x14] sm:$0xf]
        %v639 = vld [vmem:[#allocation5 + $0x18] sm:$0xf]
        %v640 = vld [vmem:[#allocation5 + $0x1c] sm:$0xf]
        %v641 = vld [vmem:[#allocation5 + $0x20] sm:$0xf]
        %v642 = vld [vmem:[#allocation5 + $0x24] sm:$0xf]
        %v643 = vld [vmem:[#allocation5 + $0x28] sm:$0xf]
        %v644 = vld [vmem:[#allocation5 + $0x2c] sm:$0xf]
        %v645 = vld [vmem:[#allocation5 + $0x30] sm:$0xf]
        %v646 = vld [vmem:[#allocation5 + $0x34] sm:$0xf]
        %v647 = vld [vmem:[#allocation5 + $0x38] sm:$0xf]
        %v648 = vld [vmem:[#allocation5 + $0x3c] sm:$0xf]
        %v649 = vld [vmem:[#allocation5 + $0x40] sm:$0xf]
        %v650 = vld [vmem:[#allocation5 + $0x44] sm:$0xf]
        %v651 = vld [vmem:[#allocation5 + $0x48] sm:$0xf]
        %v652 = vld [vmem:[#allocation5 + $0x4c] sm:$0xf]
        %v653 = vld [vmem:[%s2] sm:$0x1]
        %v655 = vperm.slane %v653, 0
        %v677 = vunpack.c.l.b16 %v633
        %v678 = vunpack.c.l.b16 %v634
        %v679 = vunpack.c.l.b16 %v635
        %v680 = vunpack.c.l.b16 %v636
        %v681 = vunpack.c.l.b16 %v637
        %v682 = vunpack.c.l.b16 %v638
        %v683 = vunpack.c.l.b16 %v639
        %v684 = vunpack.c.l.b16 %v640
        %v685 = vunpack.c.l.b16 %v641
        %v686 = vunpack.c.l.b16 %v642
        %v687 = vunpack.c.l.b16 %v643
        %v688 = vunpack.c.l.b16 %v644
        %v689 = vunpack.c.l.b16 %v645
        %v690 = vunpack.c.l.b16 %v646
        %v691 = vunpack.c.l.b16 %v647
        %v692 = vunpack.c.l.b16 %v648
        %v693 = vunpack.c.l.b16 %v649
        %v694 = vunpack.c.l.b16 %v650
        %v695 = vunpack.c.l.b16 %v651
        %v696 = vunpack.c.l.b16 %v652
        %v697 = vpack.c.b16 %v678, %v677
        %v698 = vpack.c.b16 %v680, %v679
        %v699 = vpack.c.b16 %v682, %v681
        %v700 = vpack.c.b16 %v684, %v683
        %v701 = vpack.c.b16 %v686, %v685
        %v702 = vpack.c.b16 %v688, %v687
        %v703 = vpack.c.b16 %v690, %v689
        %v704 = vpack.c.b16 %v692, %v691
        %v705 = vpack.c.b16 %v694, %v693
        %v706 = vpack.c.b16 %v696, %v695
        %v718 = vsel %vm574, %v507, 0
        %v721 = vsel %vm574, %v509, 0
        %v724 = vsel %vm574, %v511, 0
        %v727 = vsel %vm574, %v513, 0
        %v730 = vsel %vm574, %v515, 0
        %v733 = vsel %vm574, %v517, 0
        %v736 = vsel %vm574, %v519, 0
        %v738 = vsel %vm574, %v522, 0
        %740 = vmatpush.bf16.msra.mxu0 %v704
        %741 = vmatpush.bf16.msra.mxu0 %v703
        %742 = vmatpush.bf16.msra.mxu0 %v702
        %743 = vmatpush.bf16.msra.mxu0 %v701
        %744 = vmatpush.bf16.msra.mxu0 %v700
        %745 = vmatpush.bf16.msra.mxu0 %v699
        %746 = vmatpush.bf16.msra.mxu0 %v698
        %747 = vmatpush.bf16.msra.mxu0 %v697
        %748 = vmatmul.bf16.gmra.mxu0 %v610
        %v749 = vpop.f32.mrf.mxu0
        %v750 = vadd.f32 %v655, %v749
        %v751 = vpop.f32.mrf.mxu0
        %v752 = vadd.f32 %v655, %v751
        %753 = vmatmul.bf16.gmra.mxu0 %v613
        %v754 = vpop.f32.mrf.mxu0
        %v755 = vadd.f32 %v655, %v754
        %v756 = vpop.f32.mrf.mxu0
        %v757 = vadd.f32 %v655, %v756
        %758 = vmatmul.bf16.gmra.mxu0 %v616
        %v759 = vpop.f32.mrf.mxu0
        %v760 = vadd.f32 %v655, %v759
        %v761 = vpop.f32.mrf.mxu0
        %v762 = vadd.f32 %v655, %v761
        %763 = vmatmul.bf16.gmra.mxu0 %v619
        %v764 = vpop.f32.mrf.mxu0
        %v765 = vadd.f32 %v655, %v764
        %v766 = vpop.f32.mrf.mxu0
        %v767 = vadd.f32 %v655, %v766
        %768 = vmatmul.bf16.gmra.mxu0 %v622
        %v769 = vpop.f32.mrf.mxu0
        %v770 = vadd.f32 %v655, %v769
        %v771 = vpop.f32.mrf.mxu0
        %v772 = vadd.f32 %v655, %v771
        %773 = vmatmul.bf16.gmra.mxu0 %v625
        %v774 = vpop.f32.mrf.mxu0
        %v775 = vadd.f32 %v655, %v774
        %v776 = vpop.f32.mrf.mxu0
        %v777 = vadd.f32 %v655, %v776
        %778 = vmatmul.bf16.gmra.mxu0 %v628
        %v779 = vpop.f32.mrf.mxu0
        %v780 = vadd.f32 %v655, %v779
        %v781 = vpop.f32.mrf.mxu0
        %v782 = vadd.f32 %v655, %v781
        %783 = vmatmul.bf16.gmra.mxu0 %v631
        %v784 = vpop.f32.mrf.mxu0
        %v785 = vadd.f32 %v655, %v784
        %v786 = vpop.f32.mrf.mxu0
        %v787 = vadd.f32 %v655, %v786
        %788 = vdwg.mxu0
        %789 = vmatpush.bf16.msra.mxu0 0
        %790 = vmatpush.bf16.msra.mxu0 0
        %791 = vmatpush.bf16.msra.mxu0 0
        %792 = vmatpush.bf16.msra.mxu0 0
        %793 = vmatpush.bf16.msra.mxu0 0
        %794 = vmatpush.bf16.msra.mxu0 0
        %795 = vmatpush.bf16.msra.mxu0 %v706
        %796 = vmatpush.bf16.msra.mxu0 %v705
        %797 = vmatmul.bf16.gmra.mxu0 %v718
        %v798 = vpop.f32.mrf.mxu0
        %v799 = vadd.f32 %v750, %v798
        %v800 = vpop.f32.mrf.mxu0
        %v801 = vadd.f32 %v752, %v800
        %802 = vmatmul.bf16.gmra.mxu0 %v721
        %v803 = vpop.f32.mrf.mxu0
        %v804 = vadd.f32 %v755, %v803
        %v805 = vpop.f32.mrf.mxu0
        %v806 = vadd.f32 %v757, %v805
        %807 = vmatmul.bf16.gmra.mxu0 %v724
        %v808 = vpop.f32.mrf.mxu0
        %v809 = vadd.f32 %v760, %v808
        %v810 = vpop.f32.mrf.mxu0
        %v811 = vadd.f32 %v762, %v810
        %812 = vmatmul.bf16.gmra.mxu0 %v727
        %v813 = vpop.f32.mrf.mxu0
        %v814 = vadd.f32 %v765, %v813
        %v815 = vpop.f32.mrf.mxu0
        %v816 = vadd.f32 %v767, %v815
        %817 = vmatmul.bf16.gmra.mxu0 %v730
        %v818 = vpop.f32.mrf.mxu0
        %v819 = vadd.f32 %v770, %v818
        %v820 = vpop.f32.mrf.mxu0
        %v821 = vadd.f32 %v772, %v820
        %822 = vmatmul.bf16.gmra.mxu0 %v733
        %v823 = vpop.f32.mrf.mxu0
        %v824 = vadd.f32 %v775, %v823
        %v825 = vpop.f32.mrf.mxu0
        %v826 = vadd.f32 %v777, %v825
        %827 = vmatmul.bf16.gmra.mxu0 %v736
        %v828 = vpop.f32.mrf.mxu0
        %v829 = vadd.f32 %v780, %v828
        %v830 = vpop.f32.mrf.mxu0
        %v831 = vadd.f32 %v782, %v830
        %832 = vmatmul.bf16.gmra.mxu0 %v738
        %v833 = vpop.f32.mrf.mxu0
        %v834 = vadd.f32 %v785, %v833
        %v835 = vpop.f32.mrf.mxu0
        %v836 = vadd.f32 %v787, %v835
        %837 = vdwg.mxu0
        %v838 = vmax.f32 %v799, 0.0
        %v839 = vmax.f32 %v801, 0.0
        %v840 = vmax.f32 %v804, 0.0
        %v841 = vmax.f32 %v806, 0.0
        %v842 = vmax.f32 %v809, 0.0
        %v843 = vmax.f32 %v811, 0.0
        %v844 = vmax.f32 %v814, 0.0
        %v845 = vmax.f32 %v816, 0.0
        %v846 = vmax.f32 %v819, 0.0
        %v847 = vmax.f32 %v821, 0.0
        %v848 = vmax.f32 %v824, 0.0
        %v849 = vmax.f32 %v826, 0.0
        %v850 = vmax.f32 %v829, 0.0
        %v851 = vmax.f32 %v831, 0.0
        %v852 = vmax.f32 %v834, 0.0
        %v853 = vmax.f32 %v836, 0.0
        %v854 = vld [vmem:[#allocation7] sm:$0xff]
        %v855 = vld [vmem:[#allocation7 + $0x8] sm:$0xff]
        %v856 = vmul.f32 %v838, %v854
        %v857 = vmul.f32 %v839, %v855
        %v858 = vmul.f32 %v840, %v854
        %v859 = vmul.f32 %v841, %v855
        %v860 = vmul.f32 %v842, %v854
        %v861 = vmul.f32 %v843, %v855
        %v862 = vmul.f32 %v844, %v854
        %v863 = vmul.f32 %v845, %v855
        %v864 = vmul.f32 %v846, %v854
        %v865 = vmul.f32 %v847, %v855
        %v866 = vmul.f32 %v848, %v854
        %v867 = vmul.f32 %v849, %v855
        %v868 = vmul.f32 %v850, %v854
        %v869 = vmul.f32 %v851, %v855
        %v870 = vmul.f32 %v852, %v854
        %v871 = vmul.f32 %v853, %v855
        %v872 = vmax.f32 %v856, %v857
        %v873 = vrot.slane %v872, 4
        %v874 = vmax.f32 %v872, %v873
        %v875 = vrot.slane %v874, 2
        %v876 = vmax.f32 %v874, %v875
        %v877 = vrot.slane %v876, 1
        %v878 = vmax.f32 %v876, %v877
        %v879 = vmax.f32 %v858, %v859
        %v880 = vrot.slane %v879, 4
        %v881 = vmax.f32 %v879, %v880
        %v882 = vrot.slane %v881, 2
        %v883 = vmax.f32 %v881, %v882
        %v884 = vrot.slane %v883, 1
        %v885 = vmax.f32 %v883, %v884
        %v886 = vmax.f32 %v860, %v861
        %v887 = vrot.slane %v886, 4
        %v888 = vmax.f32 %v886, %v887
        %v889 = vrot.slane %v888, 2
        %v890 = vmax.f32 %v888, %v889
        %v891 = vrot.slane %v890, 1
        %v892 = vmax.f32 %v890, %v891
        %v893 = vmax.f32 %v862, %v863
        %v894 = vrot.slane %v893, 4
        %v895 = vmax.f32 %v893, %v894
        %v896 = vrot.slane %v895, 2
        %v897 = vmax.f32 %v895, %v896
        %v898 = vrot.slane %v897, 1
        %v899 = vmax.f32 %v897, %v898
        %v900 = vmax.f32 %v864, %v865
        %v901 = vrot.slane %v900, 4
        %v902 = vmax.f32 %v900, %v901
        %v903 = vrot.slane %v902, 2
        %v904 = vmax.f32 %v902, %v903
        %v905 = vrot.slane %v904, 1
        %v906 = vmax.f32 %v904, %v905
        %v907 = vmax.f32 %v866, %v867
        %v908 = vrot.slane %v907, 4
        %v909 = vmax.f32 %v907, %v908
        %v910 = vrot.slane %v909, 2
        %v911 = vmax.f32 %v909, %v910
        %v912 = vrot.slane %v911, 1
        %v913 = vmax.f32 %v911, %v912
        %v914 = vmax.f32 %v868, %v869
        %v915 = vrot.slane %v914, 4
        %v916 = vmax.f32 %v914, %v915
        %v917 = vrot.slane %v916, 2
        %v918 = vmax.f32 %v916, %v917
        %v919 = vrot.slane %v918, 1
        %v920 = vmax.f32 %v918, %v919
        %v921 = vmax.f32 %v870, %v871
        %v922 = vrot.slane %v921, 4
        %v923 = vmax.f32 %v921, %v922
        %v924 = vrot.slane %v923, 2
        %v925 = vmax.f32 %v923, %v924
        %v926 = vrot.slane %v925, 1
        %v927 = vmax.f32 %v925, %v926
        %v928 = vpack.c.bf16 %v878, %v878
        %v929 = vpack.c.bf16 %v885, %v885
        %v930 = vpack.c.bf16 %v892, %v892
        %v931 = vpack.c.bf16 %v899, %v899
        %v932 = vpack.c.bf16 %v906, %v906
        %v933 = vpack.c.bf16 %v913, %v913
        %v934 = vpack.c.bf16 %v920, %v920
        %v935 = vpack.c.bf16 %v927, %v927
        %v936 = vld [vmem:[#allocation8] sm:$0xf]
        %v937 = vld [vmem:[#allocation8 + $0x4] sm:$0xf]
        %v938 = vld [vmem:[#allocation8 + $0x8] sm:$0xf]
        %v939 = vld [vmem:[#allocation8 + $0xc] sm:$0xf]
        %v940 = vld [vmem:[#allocation8 + $0x10] sm:$0xf]
        %v941 = vld [vmem:[#allocation8 + $0x14] sm:$0xf]
        %v942 = vld [vmem:[#allocation8 + $0x18] sm:$0xf]
        %v943 = vld [vmem:[#allocation8 + $0x1c] sm:$0xf]
        %v944 = vld [vmem:[#allocation8 + $0x20] sm:$0xf]
        %v945 = vld [vmem:[#allocation8 + $0x24] sm:$0xf]
        %v946 = vld [vmem:[#allocation8 + $0x28] sm:$0xf]
        %v947 = vld [vmem:[#allocation8 + $0x2c] sm:$0xf]
        %v948 = vld [vmem:[#allocation8 + $0x30] sm:$0xf]
        %v949 = vld [vmem:[#allocation8 + $0x34] sm:$0xf]
        %v950 = vld [vmem:[#allocation8 + $0x38] sm:$0xf]
        %v951 = vld [vmem:[#allocation8 + $0x3c] sm:$0xf]
        %v952 = vld [vmem:[%s5] sm:$0x1]
        %v954 = vperm.slane %v952, 0
        %v964 = vunpack.c.l.b16 %v928
        %v965 = vunpack.c.l.b16 %v929
        %v966 = vunpack.c.l.b16 %v930
        %v967 = vunpack.c.l.b16 %v931
        %v968 = vunpack.c.l.b16 %v932
        %v969 = vunpack.c.l.b16 %v933
        %v970 = vunpack.c.l.b16 %v934
        %v971 = vunpack.c.l.b16 %v935
        %vm972 = vcmask 1041409
        %v973 = vsel %vm972, %v965, %v964
        %vm974 = vcmask 1042434
        %v975 = vsel %vm974, %v966, %v973
        %vm976 = vcmask 1043459
        %v977 = vsel %vm976, %v967, %v975
        %vm978 = vcmask 1044484
        %v979 = vsel %vm978, %v968, %v977
        %vm980 = vcmask 1045509
        %v981 = vsel %vm980, %v969, %v979
        %vm982 = vcmask 1046534
        %v983 = vsel %vm982, %v970, %v981
        %vm984 = vcmask 1047559
        %v985 = vsel %vm984, %v971, %v983
        %v986 = vpack.c.b16 %v985, %v985
        %v1004 = vunpack.c.l.b16 %v936
        %v1005 = vunpack.c.l.b16 %v937
        %v1006 = vunpack.c.l.b16 %v938
        %v1007 = vunpack.c.l.b16 %v939
        %v1008 = vunpack.c.l.b16 %v940
        %v1009 = vunpack.c.l.b16 %v941
        %v1010 = vunpack.c.l.b16 %v942
        %v1011 = vunpack.c.l.b16 %v943
        %v1012 = vunpack.c.l.b16 %v944
        %v1013 = vunpack.c.l.b16 %v945
        %v1014 = vunpack.c.l.b16 %v946
        %v1015 = vunpack.c.l.b16 %v947
        %v1016 = vunpack.c.l.b16 %v948
        %v1017 = vunpack.c.l.b16 %v949
        %v1018 = vunpack.c.l.b16 %v950
        %v1019 = vunpack.c.l.b16 %v951
        %v1020 = vpack.c.b16 %v1005, %v1004
        %v1021 = vpack.c.b16 %v1007, %v1006
        %v1022 = vpack.c.b16 %v1009, %v1008
        %v1023 = vpack.c.b16 %v1011, %v1010
        %v1024 = vpack.c.b16 %v1013, %v1012
        %v1025 = vpack.c.b16 %v1015, %v1014
        %v1026 = vpack.c.b16 %v1017, %v1016
        %v1027 = vpack.c.b16 %v1019, %v1018
        %1036 = vmatpush.bf16.msra.mxu0 %v1027
        %1037 = vmatpush.bf16.msra.mxu0 %v1026
        %1038 = vmatpush.bf16.msra.mxu0 %v1025
        %1039 = vmatpush.bf16.msra.mxu0 %v1024
        %1040 = vmatpush.bf16.msra.mxu0 %v1023
        %1041 = vmatpush.bf16.msra.mxu0 %v1022
        %1042 = vmatpush.bf16.msra.mxu0 %v1021
        %1043 = vmatpush.bf16.msra.mxu0 %v1020
        %1044 = vmatmul.bf16.gmra.mxu0 %v986
        %v1045 = vpop.f32.mrf.mxu0
        %v1046 = vadd.f32 %v954, %v1045
        %v1047 = vpop.f32.mrf.mxu0
        %1048 = vdwg.mxu0
        %1049 = vst [vmem:[%s322] sm:$0xff] %v1046
        %s1050 = sand.u32 %s164, 1
        %s1051 = scalar_lea.sflag [#allocation4], %s1050
        %s1052 = sand.u32 %s164, 1
        %s1053 = smul.addr %s1052, 8
        %s1054 = scalar_lea.vmem [#allocation10], %s1053
        // Predicated region
        $region61: #{tpu_custom_call.1} parent=43 // pred_check
          %p1055 = pneg %p174
        $region62: #{tpu_custom_call.1} parent=43 // pred_check_branch
          %1057 = sbr.rel (%p1055) target = $region64
        $region63: #{tpu_custom_call.1} parent=43 // pred_region
          %1059 = vsyncadd %s1051, 0
          %s1060 = smul.addr %s25, 8
          %s1061 = scalar_lea.hbm %s6, %s1060
          %s1063 = sshll.u32 %s1054, 4
          %s1064 = int_to_ptr.vmem [resolvable:$true] %s1063
          %s1065 = sshll.u32 %s1061, 4
          %s1066 = int_to_ptr.hbm [resolvable:$true] %s1065
          %1068 = dma.vmem_to_hbm [thread:$0]  %s1064, 128, %s1066, %s1051
        $region64: #{tpu_custom_call.1} parent=43 // pred_fallthru
          _
      $region44: #{tpu_custom_call.1} parent=5 // pred_fallthru
        _
      %p1069 = scmp.le.s32.totalorder 2, %s20
      // Predicated region
      $region65: #{tpu_custom_call.1} parent=5 // pred_check
        %p1070 = pneg %p1069
      $region66: #{tpu_custom_call.1} parent=5 // pred_check_branch
        %1072 = sbr.rel (%p1070) target = $region68
      $region67: #{tpu_custom_call.1} parent=5 // pred_region
        %s1073 = ssub.s32 %s20, 2
        // Predicated region
        $region69: #{tpu_custom_call.1} parent=67 // pred_check
          %p1074 = pneg %p180
        $region70: #{tpu_custom_call.1} parent=67 // pred_check_branch
          %1076 = sbr.rel (%p1074) target = $region72
        $region71: #{tpu_custom_call.1} parent=67 // pred_region
          %s1077 = sand.u32 %s165, 1
          %s1078 = scalar_lea.sflag [#allocation4], %s1077
          %s1079 = sand.u32 %s165, 1
          %s1080 = smul.addr %s1079, 8
          %s1081 = scalar_lea.vmem [#allocation10], %s1080
          %1083 = dma.done %s1078, 128
        $region72: #{tpu_custom_call.1} parent=67 // pred_fallthru
          _
      $region68: #{tpu_custom_call.1} parent=5 // pred_fallthru
        _
    $region6: #{tpu_custom_call.1} parent=1 // loop_footer
      %s24 = sadd.s32 1, %s20
    $region7: #{tpu_custom_call.1} parent=1 // loop_footer_branch
      %19 = sbr.rel target = $region3
    $region8: #{tpu_custom_call.1} parent=1 // loop_exit
      _
    %1084 = vsyncpa [#allocation3], 1
    %s1085 = scalar_lea.sflag [#allocation3], 1
    %1086 = vsyncpa %s1085, 1
    %1087 = vsyncpa [#allocation6], 1
    %1088 = vsyncpa [#allocation9], 1
    %1089 = vsyncpa [#allocation4], 1
    %s1090 = scalar_lea.sflag [#allocation4], 1
    %1091 = vsyncpa %s1090, 1

</llo_original>
